<compile_context>
chip_gen: v6e
topology: v6e:2x2x1
jax: 0.10.0
libtpu: 0.0.40
codegen_flags: <defaults>
</compile_context>

<pallas_src>
import jax
import jax.numpy as jnp
from jax.experimental import pallas as pl
from jax.experimental.pallas import tpu as pltpu


def _mlp_kernel(x_ref, w1_ref, w2_ref, w3_ref, aux_ref, out_ref):
    """MLP hot path. Activations are [features, block_b] (batch on lanes).

    x_ref   : [d_in, TB] bf16
    w*_ref  : [out_f, in_f] bf16 (BN folded into w2/w3)
    aux_ref : [H, 8] f32 -- cols 0..2 = biases b1/b2/b3, col 3 = head weight,
              aux[0, 4] = head bias.
    """
    h = jnp.dot(w1_ref[...], x_ref[...], preferred_element_type=jnp.float32)
    h = jnp.maximum(h + aux_ref[:, 0:1], 0.0)                           # [H, TB]

    h = jnp.dot(w2_ref[...], h.astype(jnp.bfloat16),
                preferred_element_type=jnp.float32)
    h = jnp.maximum(h + aux_ref[:, 1:2], 0.0)

    h = jnp.dot(w3_ref[...], h.astype(jnp.bfloat16),
                preferred_element_type=jnp.float32)
    h = jnp.maximum(h + aux_ref[:, 2:3], 0.0)

    # Head Linear(H, 1): elementwise multiply (VPU) + sublane reduce (XLU)
    # instead of an N=1 matmul that would waste 127/128 MXU columns.
    # Store is lane-dense: [1, TB].
    out_ref[...] = (jnp.sum(h * aux_ref[:, 3:4], axis=0, keepdims=True)
                    + aux_ref[0:1, 4:5])


def init_params(key, num_node_features, num_edge_features, hidden_dim):
    """Deterministic synthetic parameters matching the PyTorch module shapes."""
    d_in = num_edge_features + 2 * num_node_features
    keys = jax.random.split(key, 32)
    ki = iter(range(32))

    def linear(fan_in, fan_out):
        bound = 1.0 / jnp.sqrt(jnp.float32(fan_in))
        w = jax.random.uniform(keys[next(ki)], (fan_in, fan_out),
                               jnp.float32, -bound, bound)
        b = jax.random.uniform(keys[next(ki)], (1, fan_out),
                               jnp.float32, -bound, bound)
        return w, b

    def batchnorm(dim):
        gamma = 1.0 + 0.1 * jax.random.normal(keys[next(ki)], (1, dim), jnp.float32)
        beta = 0.1 * jax.random.normal(keys[next(ki)], (1, dim), jnp.float32)
        rmean = 0.05 * jax.random.normal(keys[next(ki)], (1, dim), jnp.float32)
        rvar = 1.0 + 0.1 * jnp.abs(
            jax.random.normal(keys[next(ki)], (1, dim), jnp.float32))
        return gamma, beta, rmean, rvar

    p = {}
    p["w1"], p["b1"] = linear(d_in, hidden_dim)
    p["bn1"] = batchnorm(hidden_dim)
    p["w2"], p["b2"] = linear(hidden_dim, hidden_dim)
    p["bn2"] = batchnorm(hidden_dim)
    p["w3"], p["b3"] = linear(hidden_dim, hidden_dim)
    p["bn3"] = batchnorm(hidden_dim)
    p["w4"], p["b4"] = linear(hidden_dim, 1)
    return p


def _fold_bn(bn, eps=1e-5):
    gamma, beta, rmean, rvar = bn
    scale = gamma * jax.lax.rsqrt(rvar + eps)
    shift = beta - rmean * scale
    return scale, shift


def _round_up(x, m):
    return ((x + m - 1) // m) * m


def fc_edge_regressor_forward(params, x_nodes, x_edges_batch, edge_indices_batch,
                              edge_indices=None, edge_weight=None, *,
                              block_b=8192):
    # --- glue: gather endpoint node features and build the kernel input
    # directly in [d_in, B] layout (batch on lanes) and in bf16, so x is
    # materialized in HBM once at half the f32 byte count (no extra
    # transpose/pad passes).
    # TODO(synk): fuse this gather+concat into the kernel via scalar-prefetched
    #             edge indices + VMEM-resident x_nodes.
    xn_t = x_nodes.astype(jnp.bfloat16).T                 # [D, N] (tiny)
    x_t = jnp.concatenate([
        xn_t[:, edge_indices_batch[:, 0]],                # [D, B]
        x_edges_batch.astype(jnp.bfloat16).T,             # [K, B]
        xn_t[:, edge_indices_batch[:, 1]],                # [D, B]
    ], axis=0)                                            # [d_in, B] bf16
    d_in, B = x_t.shape
    H = params["w1"].shape[1]

    # B sits on the lane axis -> the tile must be a multiple of 128.  Large
    # tiles amortize the ~0.35us per-grid-step overhead; keep at least two
    # blocks when B >= 256 so the "parallel" batch axis can feed both
    # TensorCores on v7x.
    block_b = max(128, _round_up(int(block_b), 128))
    if B <= block_b:
        if B >= 256:
            block_b = max(128, _round_up(pl.cdiv(B, 2), 128))
        else:
            block_b = 128
    # Only pad when B is smaller than one lane tile; otherwise rely on Pallas
    # masking of the ragged boundary block (lanes are independent and any
    # out-of-range lanes are sliced off at the end).
    if B < 128:
        x_t = jnp.pad(x_t, ((0, 0), (0, 128 - B)))
    B_arr = x_t.shape[1]
    n_blocks = pl.cdiv(B_arr, block_b)

    # Fold eval-mode BatchNorm into the next Linear layer (one-time precompute).
    s1, t1 = _fold_bn(params["bn1"])
    s2, t2 = _fold_bn(params["bn2"])
    s3, t3 = _fold_bn(params["bn3"])
    w2f = params["w2"] * s1.T
    b2f = params["b2"] + t1 @ params["w2"]
    w3f = params["w3"] * s2.T
    b3f = params["b3"] + t2 @ params["w3"]
    w4f = params["w4"] * s3.T                    # [H, 1]
    b4f = params["b4"] + t3 @ params["w4"]       # [1, 1]

    # Kernel layout: [features_out, features_in] weights in bf16 (f32 matmuls
    # are multi-pass emulated on the MXU; bf16 + f32 accumulation is native).
    w1t = params["w1"].T.astype(jnp.bfloat16)    # [H, d_in]
    w2t = w2f.T.astype(jnp.bfloat16)             # [H, H]
    w3t = w3f.T.astype(jnp.bfloat16)             # [H, H]

    # Merge the small f32 operands into one [H, 8] array (fewer operands/DMAs):
    # cols 0..2 = biases of layers 1..3, col 3 = head weight, [0,4] = head bias.
    aux = jnp.zeros((H, 8), jnp.float32)
    aux = aux.at[:, 0].set(params["b1"][0])
    aux = aux.at[:, 1].set(b2f[0])
    aux = aux.at[:, 2].set(b3f[0])
    aux = aux.at[:, 3].set(w4f[:, 0])
    aux = aux.at[0, 4].set(b4f[0, 0])

    weight_bytes = 2 * (w1t.size + w2t.size + w3t.size) + 4 * aux.size
    cost = pl.CostEstimate(
        flops=2 * B_arr * (d_in * H + 2 * H * H + H),
        transcendentals=0,
        bytes_accessed=2 * B_arr * d_in + 4 * B_arr + weight_bytes,
    )

    def rep(shape):
        # Weights: same full block every grid step (stay VMEM-resident).
        return pl.BlockSpec(shape, lambda i: (0, 0))

    out = pl.pallas_call(
        _mlp_kernel,
        out_shape=jax.ShapeDtypeStruct((1, B_arr), jnp.float32),
        grid=(n_blocks,),
        in_specs=[
            pl.BlockSpec((d_in, block_b), lambda i: (0, i)),   # x tile
            rep((H, d_in)),
            rep((H, H)),
            rep((H, H)),
            rep((H, 8)),
        ],
        out_specs=pl.BlockSpec((1, block_b), lambda i: (0, i)),
        compiler_params=pltpu.CompilerParams(
            dimension_semantics=("parallel",)),
        cost_estimate=cost,
    )(x_t, w1t, w2t, w3t, aux)

    # PyTorch forward returns core(x).squeeze(-1) -> shape [B].
    return out[0, :B]


def _reference_forward(params, x_nodes, x_edges_batch, edge_indices_batch):
    """Pure-JAX f32 reference (layer-by-layer, eval-mode BN) for correctness."""
    x_left = x_nodes[edge_indices_batch[:, 0]]
    x_right = x_nodes[edge_indices_batch[:, 1]]
    h = jnp.concatenate([x_left, x_edges_batch, x_right], axis=-1).astype(jnp.float32)
    for wk, bk, bnk in (("w1", "b1", "bn1"), ("w2", "b2", "bn2"), ("w3", "b3", "bn3")):
        h = h @ params[wk] + params[bk]
        h = jnp.maximum(h, 0.0)
        s, t = _fold_bn(params[bnk])
        h = h * s + t
    out = h @ params["w4"] + params["b4"]
    return out[:, 0]


if __name__ == "__main__":
    # Small shapes consistent with the module's forward.
    N = 16                 # number of nodes
    D = 4                  # num_node_features
    K = 4                  # num_edge_features
    H = 32                 # hidden_dim
    B = 8                  # edges in the batch
    E = 10                 # edges in the full graph (unused by forward)

    key = jax.random.PRNGKey(0)
    k_param, k_nodes, k_edges, k_idx_b, k_idx = jax.random.split(key, 5)

    params = init_params(k_param, D, K, H)

    x_nodes = jax.random.normal(k_nodes, (N, D), jnp.float32)
    x_edges_batch = jax.random.normal(k_edges, (B, K), jnp.float32)
    edge_indices_batch = jax.random.randint(k_idx_b, (B, 2), 0, N, jnp.int32)
    edge_indices = jax.random.randint(k_idx, (2, E), 0, N, jnp.int32)

    out = fc_edge_regressor_forward(params, x_nodes, x_edges_batch,
                                    edge_indices_batch, edge_indices)
    out = jax.block_until_ready(out)

    ref = _reference_forward(params, x_nodes, x_edges_batch, edge_indices_batch)
    assert out.shape == (B,), out.shape
    # bf16 matmul inputs, f32 accumulation -> relaxed tolerance vs f32 ref.
    assert jnp.allclose(out, ref, atol=5e-2, rtol=5e-2), (out, ref)

    # Second check: multi-block grid + ragged boundary block (no explicit pad).
    B2 = 200
    k_e2, k_i2 = jax.random.split(k_idx, 2)
    x_edges2 = jax.random.normal(k_e2, (B2, K), jnp.float32)
    idx2 = jax.random.randint(k_i2, (B2, 2), 0, N, jnp.int32)
    out2 = jax.block_until_ready(
        fc_edge_regressor_forward(params, x_nodes, x_edges2, idx2,
                                  edge_indices, block_b=128))
    ref2 = _reference_forward(params, x_nodes, x_edges2, idx2)
    assert out2.shape == (B2,), out2.shape
    assert jnp.allclose(out2, ref2, atol=5e-2, rtol=5e-2)

    # Third check: default block_b with B >= 256 -> two-block megacore split
    # plus a masked boundary block.
    B3 = 300
    k_e3, k_i3 = jax.random.split(k_e2, 2)
    x_edges3 = jax.random.normal(k_e3, (B3, K), jnp.float32)
    idx3 = jax.random.randint(k_i3, (B3, 2), 0, N, jnp.int32)
    out3 = jax.block_until_ready(
        fc_edge_regressor_forward(params, x_nodes, x_edges3, idx3, edge_indices))
    ref3 = _reference_forward(params, x_nodes, x_edges3, idx3)
    assert out3.shape == (B3,), out3.shape
    assert jnp.allclose(out3, ref3, atol=5e-2, rtol=5e-2)

    print("KERNEL_OK")
</pallas_src>

<mosaic_0001>
module attributes {stable_mosaic.version = 11 : i64} {
  func.func @_mlp_kernel(%arg0: i32, %arg1: memref<12x128xbf16, #tpu.memory_space<vmem>>, %arg2: memref<32x12xbf16, #tpu.memory_space<vmem>>, %arg3: memref<32x32xbf16, #tpu.memory_space<vmem>>, %arg4: memref<32x32xbf16, #tpu.memory_space<vmem>>, %arg5: memref<32x8xf32, #tpu.memory_space<vmem>>, %arg6: memref<1x128xf32, #tpu.memory_space<vmem>>) attributes {dimension_semantics = [#tpu.dimension_semantics<parallel>], iteration_bounds = array<i64: 1>, scalar_prefetch = 0 : i64, scratch_operands = 0 : i64, tpu.core_type = #tpu.core_type<tc>, window_params = [{transform_indices = @transform_0, window_bounds = array<i64: 12, 128>}, {pipeline_mode = #tpu.pipeline_mode<synchronous>, transform_indices = @transform_1, window_bounds = array<i64: 32, 12>}, {pipeline_mode = #tpu.pipeline_mode<synchronous>, transform_indices = @transform_2, window_bounds = array<i64: 32, 32>}, {pipeline_mode = #tpu.pipeline_mode<synchronous>, transform_indices = @transform_3, window_bounds = array<i64: 32, 32>}, {pipeline_mode = #tpu.pipeline_mode<synchronous>, transform_indices = @transform_4, window_bounds = array<i64: 32, 8>}, {transform_indices = @transform_5, window_bounds = array<i64: 1, 128>}]} {
    %c0 = arith.constant 0 : index
    %c0_0 = arith.constant 0 : index
    %0 = vector.load %arg2[%c0, %c0_0] : memref<32x12xbf16, #tpu.memory_space<vmem>>, vector<32x12xbf16>
    %c0_1 = arith.constant 0 : index
    %c0_2 = arith.constant 0 : index
    %1 = vector.load %arg1[%c0_1, %c0_2] : memref<12x128xbf16, #tpu.memory_space<vmem>>, vector<12x128xbf16>
    %cst = arith.constant dense<0.000000e+00> : vector<32x128xf32>
    %2 = tpu.matmul %0, %1, %cst {dimension_numbers = #tpu.dot_dimension_numbers<[1], [0], [0], [1], [0, 0, 1, 1], [], []>} : vector<32x12xbf16>, vector<12x128xbf16>, vector<32x128xf32> -> vector<32x128xf32>
    %c0_3 = arith.constant 0 : index
    %c0_4 = arith.constant 0 : index
    %3 = vector.load %arg5[%c0_3, %c0_4] : memref<32x8xf32, #tpu.memory_space<vmem>>, vector<32x1xf32>
    %4 = vector.broadcast %3 : vector<32x1xf32> to vector<32x128xf32>
    %5 = arith.addf %2, %4 : vector<32x128xf32>
    %cst_5 = arith.constant 0.000000e+00 : f32
    %6 = vector.broadcast %cst_5 : f32 to vector<32x128xf32>
    %7 = arith.maximumf %5, %6 : vector<32x128xf32>
    %c0_6 = arith.constant 0 : index
    %c0_7 = arith.constant 0 : index
    %8 = vector.load %arg3[%c0_6, %c0_7] : memref<32x32xbf16, #tpu.memory_space<vmem>>, vector<32x32xbf16>
    %9 = arith.truncf %7 : vector<32x128xf32> to vector<32x128xbf16>
    %cst_8 = arith.constant dense<0.000000e+00> : vector<32x128xf32>
    %10 = tpu.matmul %8, %9, %cst_8 {dimension_numbers = #tpu.dot_dimension_numbers<[1], [0], [0], [1], [0, 0, 1, 1], [], []>} : vector<32x32xbf16>, vector<32x128xbf16>, vector<32x128xf32> -> vector<32x128xf32>
    %c0_9 = arith.constant 0 : index
    %c1 = arith.constant 1 : index
    %11 = vector.load %arg5[%c0_9, %c1] : memref<32x8xf32, #tpu.memory_space<vmem>>, vector<32x1xf32>
    %12 = vector.broadcast %11 : vector<32x1xf32> to vector<32x128xf32>
    %13 = arith.addf %10, %12 : vector<32x128xf32>
    %cst_10 = arith.constant 0.000000e+00 : f32
    %14 = vector.broadcast %cst_10 : f32 to vector<32x128xf32>
    %15 = arith.maximumf %13, %14 : vector<32x128xf32>
    %c0_11 = arith.constant 0 : index
    %c0_12 = arith.constant 0 : index
    %16 = vector.load %arg4[%c0_11, %c0_12] : memref<32x32xbf16, #tpu.memory_space<vmem>>, vector<32x32xbf16>
    %17 = arith.truncf %15 : vector<32x128xf32> to vector<32x128xbf16>
    %cst_13 = arith.constant dense<0.000000e+00> : vector<32x128xf32>
    %18 = tpu.matmul %16, %17, %cst_13 {dimension_numbers = #tpu.dot_dimension_numbers<[1], [0], [0], [1], [0, 0, 1, 1], [], []>} : vector<32x32xbf16>, vector<32x128xbf16>, vector<32x128xf32> -> vector<32x128xf32>
    %c0_14 = arith.constant 0 : index
    %c2 = arith.constant 2 : index
    %19 = vector.load %arg5[%c0_14, %c2] : memref<32x8xf32, #tpu.memory_space<vmem>>, vector<32x1xf32>
    %20 = vector.broadcast %19 : vector<32x1xf32> to vector<32x128xf32>
    %21 = arith.addf %18, %20 : vector<32x128xf32>
    %cst_15 = arith.constant 0.000000e+00 : f32
    %22 = vector.broadcast %cst_15 : f32 to vector<32x128xf32>
    %23 = arith.maximumf %21, %22 : vector<32x128xf32>
    %c0_16 = arith.constant 0 : index
    %c3 = arith.constant 3 : index
    %24 = vector.load %arg5[%c0_16, %c3] : memref<32x8xf32, #tpu.memory_space<vmem>>, vector<32x1xf32>
    %25 = vector.broadcast %24 : vector<32x1xf32> to vector<32x128xf32>
    %26 = arith.mulf %23, %25 : vector<32x128xf32>
    %cst_17 = arith.constant dense<0.000000e+00> : vector<128xf32>
    %27 = vector.multi_reduction <add>, %26, %cst_17 [0] : vector<32x128xf32> to vector<128xf32>
    %28 = vector.shape_cast %27 : vector<128xf32> to vector<1x128xf32>
    %c0_18 = arith.constant 0 : index
    %c4 = arith.constant 4 : index
    %29 = vector.load %arg5[%c0_18, %c4] : memref<32x8xf32, #tpu.memory_space<vmem>>, vector<1x1xf32>
    %30 = vector.broadcast %29 : vector<1x1xf32> to vector<1x128xf32>
    %31 = arith.addf %28, %30 : vector<1x128xf32>
    %c0_19 = arith.constant 0 : index
    %c0_20 = arith.constant 0 : index
    %32 = vector.load %arg6[%c0_19, %c0_20] : memref<1x128xf32, #tpu.memory_space<vmem>>, vector<1x128xf32>
    tpu.vector_store %arg6[%c0_19, %c0_20], %31 {strides = array<i32>} : memref<1x128xf32, #tpu.memory_space<vmem>>, vector<1x128xf32>,
    return
  }
  func.func @transform_0(%arg0: i32) -> (i32, i32) {
    %c0_i32 = arith.constant 0 : i32
    %c0_i32_0 = arith.constant 0 : i32
    return %c0_i32, %arg0 : i32, i32
  }
  func.func @transform_1(%arg0: i32) -> (i32, i32) {
    %c0_i32 = arith.constant 0 : i32
    %c0_i32_0 = arith.constant 0 : i32
    %c0_i32_1 = arith.constant 0 : i32
    return %c0_i32, %c0_i32_0 : i32, i32
  }
  func.func @transform_2(%arg0: i32) -> (i32, i32) {
    %c0_i32 = arith.constant 0 : i32
    %c0_i32_0 = arith.constant 0 : i32
    %c0_i32_1 = arith.constant 0 : i32
    return %c0_i32, %c0_i32_0 : i32, i32
  }
  func.func @transform_3(%arg0: i32) -> (i32, i32) {
    %c0_i32 = arith.constant 0 : i32
    %c0_i32_0 = arith.constant 0 : i32
    %c0_i32_1 = arith.constant 0 : i32
    return %c0_i32, %c0_i32_0 : i32, i32
  }
  func.func @transform_4(%arg0: i32) -> (i32, i32) {
    %c0_i32 = arith.constant 0 : i32
    %c0_i32_0 = arith.constant 0 : i32
    %c0_i32_1 = arith.constant 0 : i32
    return %c0_i32, %c0_i32_0 : i32, i32
  }
  func.func @transform_5(%arg0: i32) -> (i32, i32) {
    %c0_i32 = arith.constant 0 : i32
    %c0_i32_0 = arith.constant 0 : i32
    return %c0_i32, %arg0 : i32, i32
  }
}

</mosaic_0001>

<llo_original>
// kernel: tpu_custom_call.1
$region0: #{tpu_custom_call.1}
  #allocation0 [shape = 'u32[]', space=smem, size = 0x4, offset = 0x4, fixed_abs, tag = 'smem constant byte address 0x4 - core index']
  #allocation1 [shape = 'u32[144,128]{1,0:T(1,128)}', space=vmem, size = 0x12000, scoped, tag = 'internal scratch']
  %s0 = inlined_call_operand.vmem [shape: bf16[12,128], index: 0, kind: input, shape index: {}]
  %s1 = inlined_call_operand.vmem [shape: bf16[32,12], index: 1, kind: input, shape index: {}]
  %s2 = inlined_call_operand.vmem [shape: bf16[32,32], index: 2, kind: input, shape index: {}]
  %s3 = inlined_call_operand.vmem [shape: bf16[32,32], index: 3, kind: input, shape index: {}]
  %s4 = inlined_call_operand.vmem [shape: f32[32,8], index: 4, kind: input, shape index: {}]
  %s5 = inlined_call_operand.hbm [shape: f32[1,128], index: 5, kind: output, shape index: {}]
  %s6 = sld [smem:[#allocation0]]
  $region30: #{tpu_custom_call.1} parent=0
    _
  %s8 = ssub.s32 1, %s6
  %s9 = scalar_select 0, %s8, %s6
  $region1: #{tpu_custom_call.1} parent=0
    #allocation2 [shape = 'u8[512]{0}', space=vmem, size = 0x400, scoped, tag = 'output window, operand 0, single buffered']
    #allocation3 [shape = 's32[1]{0}', space=sflag, size = 0x4, scoped, tag = 'scoped memory for tpu_custom_call.1']
    %10 = vsyncpa [#allocation3], 0
    // Predicated region
    $region2: #{tpu_custom_call.1} parent=1 // pred_check
      _
    $region3: #{tpu_custom_call.1} parent=1 // pred_check_branch
      %12 = sbr.rel (0) target = $region5
    $region4: #{tpu_custom_call.1} parent=1 // pred_region
      _
    $region5: #{tpu_custom_call.1} parent=1 // pred_fallthru
      _
    // Predicated region
    $region6: #{tpu_custom_call.1} parent=1 // pred_check
      _
    $region7: #{tpu_custom_call.1} parent=1 // pred_check_branch
      %14 = sbr.rel (0) target = $region9
    $region8: #{tpu_custom_call.1} parent=1 // pred_region
      _
    $region9: #{tpu_custom_call.1} parent=1 // pred_fallthru
      _
    // Predicated region
    $region10: #{tpu_custom_call.1} parent=1 // pred_check
      _
    $region11: #{tpu_custom_call.1} parent=1 // pred_check_branch
      %16 = sbr.rel (0) target = $region13
    $region12: #{tpu_custom_call.1} parent=1 // pred_region
      _
    $region13: #{tpu_custom_call.1} parent=1 // pred_fallthru
      _
    // Predicated region
    $region14: #{tpu_custom_call.1} parent=1 // pred_check
      _
    $region15: #{tpu_custom_call.1} parent=1 // pred_check_branch
      %18 = sbr.rel (0) target = $region17
    $region16: #{tpu_custom_call.1} parent=1 // pred_region
      _
    $region17: #{tpu_custom_call.1} parent=1 // pred_fallthru
      _
    // Predicated region
    $region18: #{tpu_custom_call.1} parent=1 // pred_check
      _
    $region19: #{tpu_custom_call.1} parent=1 // pred_check_branch
      %20 = sbr.rel (0) target = $region21
    $region20: #{tpu_custom_call.1} parent=1 // pred_region
      _
    $region21: #{tpu_custom_call.1} parent=1 // pred_fallthru
      _
    %v22 = vld [vmem:[%s1] sm:$0xf]
    %v23 = vld [vmem:[%s1 + $0x4] sm:$0xf]
    %v24 = vld [vmem:[%s1 + $0x8] sm:$0xf]
    %v25 = vld [vmem:[%s1 + $0xc] sm:$0xf]
    %v26 = vld [vmem:[%s0] sm:$0xf]
    %v27 = vld [vmem:[%s0 + $0x4] sm:$0x3]
    %v28 = vld [vmem:[%s4] sm:$0xff]
    %v29 = vld [vmem:[%s4 + $0x8] sm:$0xff]
    %v30 = vld [vmem:[%s4 + $0x10] sm:$0xff]
    %v31 = vld [vmem:[%s4 + $0x18] sm:$0xff]
    %33 = vset.pattern.permute.xlu0 0
    %34 = vperm.xlu0 %33, %v28
    %v35 = vpop.permute.xlu0 %34
    %38 = vset.pattern.permute.xlu0 0
    %39 = vperm.xlu0 %38, %v29
    %v40 = vpop.permute.xlu0 %39
    %43 = vset.pattern.permute.xlu0 0
    %44 = vperm.xlu0 %43, %v30
    %v45 = vpop.permute.xlu0 %44
    %48 = vset.pattern.permute.xlu0 0
    %49 = vperm.xlu0 %48, %v31
    %v50 = vpop.permute.xlu0 %49
    %v56 = vunpack.c.l.b16 %v22
    %v57 = vunpack.c.l.b16 %v23
    %v58 = vunpack.c.l.b16 %v24
    %v59 = vunpack.c.l.b16 %v25
    %v60 = vpack.c.b16 %v57, %v56
    %v61 = vpack.c.b16 %v59, %v58
    %v64 = vunpack.c.l.b16 %v26
    %v65 = vunpack.c.l.b16 %v27
    %v66 = vpack.c.b16 %v65, %v64
    %vm67 = vcmask 97280
    %v69 = vsel %vm67, %v60, 0
    %v72 = vsel %vm67, %v61, 0
    %vm74 = vcmask 1045504
    %v76 = vsel %vm74, %v66, 0
    %78 = vmatprep.subr.bf16.mxu0 0
    %79 = vmatpush1.bf16.msra.mxu0 0
    %80 = vmatprep.subr.bf16.mxu0 0
    %81 = vmatpush1.bf16.msra.mxu0 0
    %82 = vmatprep.subr.bf16.mxu0 0
    %83 = vmatpush1.bf16.msra.mxu0 0
    %84 = vmatprep.subr.bf16.mxu0 0
    %85 = vmatpush1.bf16.msra.mxu0 0
    %86 = vmatprep.subr.bf16.mxu0 0
    %87 = vmatpush1.bf16.msra.mxu0 0
    %88 = vmatprep.subr.bf16.mxu0 0
    %89 = vmatpush1.bf16.msra.mxu0 0
    %90 = vmatprep.subr.bf16.mxu0 0
    %91 = vmatpush1.bf16.msra.mxu0 0
    %92 = vmatprep.subr.bf16.mxu0 0
    %93 = vmatpush1.bf16.msra.mxu0 %v76
    %94 = vmatprep.subr.bf16.mxu0 0
    %95 = vmatpush2.bf16.msra.mxu0 0
    %96 = vmatprep.subr.bf16.mxu0 0
    %97 = vmatpush2.bf16.msra.mxu0 0
    %98 = vmatprep.subr.bf16.mxu0 0
    %99 = vmatpush2.bf16.msra.mxu0 0
    %100 = vmatprep.subr.bf16.mxu0 0
    %101 = vmatpush2.bf16.msra.mxu0 0
    %102 = vmatprep.subr.bf16.mxu0 0
    %103 = vmatpush2.bf16.msra.mxu0 0
    %104 = vmatprep.subr.bf16.mxu0 0
    %105 = vmatpush2.bf16.msra.mxu0 0
    %106 = vmatprep.subr.bf16.mxu0 0
    %107 = vmatpush2.bf16.msra.mxu0 0
    %108 = vmatprep.subr.bf16.mxu0 0
    %109 = vmatpush2.bf16.msra.mxu0 0
    %110 = vmatprep.mubr.bf16.mxu0 0
    %111 = vmatmul.mubr.bf16.gmra.mxu0 %v69
    %v112 = vpop.f32.mrf.mxu0
    %v113 = vadd.f32 %v35, %v112
    %v114 = vpop.f32.mrf.mxu0
    %v115 = vpop.f32.mrf.mxu0
    %v116 = vadd.f32 %v40, %v115
    %v117 = vpop.f32.mrf.mxu0
    %118 = vmatprep.mubr.bf16.mxu0 0
    %119 = vmatmul.mubr.bf16.gmra.mxu0 %v72
    %v120 = vpop.f32.mrf.mxu0
    %v121 = vadd.f32 %v45, %v120
    %v122 = vpop.f32.mrf.mxu0
    %v123 = vpop.f32.mrf.mxu0
    %v124 = vadd.f32 %v50, %v123
    %v125 = vpop.f32.mrf.mxu0
    %126 = vdwg.mxu0
    %v127 = vmax.f32 %v113, 0.0
    %v128 = vmax.f32 %v116, 0.0
    %v129 = vmax.f32 %v121, 0.0
    %v130 = vmax.f32 %v124, 0.0
    %v131 = vld [vmem:[%s2] sm:$0xf]
    %v132 = vld [vmem:[%s2 + $0x4] sm:$0xf]
    %v133 = vld [vmem:[%s2 + $0x8] sm:$0xf]
    %v134 = vld [vmem:[%s2 + $0xc] sm:$0xf]
    %v135 = vpack.c.bf16 %v128, %v127
    %v136 = vpack.c.bf16 %v130, %v129
    %137 = vset.pattern.permute.xlu0 1
    %138 = vperm.xlu0 %137, %v28
    %v139 = vpop.permute.xlu0 %138
    %141 = vset.pattern.permute.xlu0 1
    %142 = vperm.xlu0 %141, %v29
    %v143 = vpop.permute.xlu0 %142
    %145 = vset.pattern.permute.xlu0 1
    %146 = vperm.xlu0 %145, %v30
    %v147 = vpop.permute.xlu0 %146
    %149 = vset.pattern.permute.xlu0 1
    %150 = vperm.xlu0 %149, %v31
    %v151 = vpop.permute.xlu0 %150
    %v157 = vunpack.c.l.b16 %v131
    %v158 = vunpack.c.l.b16 %v132
    %v159 = vunpack.c.l.b16 %v133
    %v160 = vunpack.c.l.b16 %v134
    %v161 = vpack.c.b16 %v158, %v157
    %v162 = vpack.c.b16 %v160, %v159
    %vm163 = vcmask 261120
    %v165 = vsel %vm163, %v161, 0
    %v168 = vsel %vm163, %v162, 0
    %170 = vmatprep.subr.bf16.mxu0 0
    %171 = vmatpush1.bf16.msra.mxu0 0
    %172 = vmatprep.subr.bf16.mxu0 0
    %173 = vmatpush1.bf16.msra.mxu0 0
    %174 = vmatprep.subr.bf16.mxu0 0
    %175 = vmatpush1.bf16.msra.mxu0 0
    %176 = vmatprep.subr.bf16.mxu0 0
    %177 = vmatpush1.bf16.msra.mxu0 0
    %178 = vmatprep.subr.bf16.mxu0 0
    %179 = vmatpush1.bf16.msra.mxu0 0
    %180 = vmatprep.subr.bf16.mxu0 0
    %181 = vmatpush1.bf16.msra.mxu0 0
    %182 = vmatprep.subr.bf16.mxu0 0
    %183 = vmatpush1.bf16.msra.mxu0 %v136
    %184 = vmatprep.subr.bf16.mxu0 0
    %185 = vmatpush1.bf16.msra.mxu0 %v135
    %186 = vmatprep.subr.bf16.mxu0 0
    %187 = vmatpush2.bf16.msra.mxu0 0
    %188 = vmatprep.subr.bf16.mxu0 0
    %189 = vmatpush2.bf16.msra.mxu0 0
    %190 = vmatprep.subr.bf16.mxu0 0
    %191 = vmatpush2.bf16.msra.mxu0 0
    %192 = vmatprep.subr.bf16.mxu0 0
    %193 = vmatpush2.bf16.msra.mxu0 0
    %194 = vmatprep.subr.bf16.mxu0 0
    %195 = vmatpush2.bf16.msra.mxu0 0
    %196 = vmatprep.subr.bf16.mxu0 0
    %197 = vmatpush2.bf16.msra.mxu0 0
    %198 = vmatprep.subr.bf16.mxu0 0
    %199 = vmatpush2.bf16.msra.mxu0 0
    %200 = vmatprep.subr.bf16.mxu0 0
    %201 = vmatpush2.bf16.msra.mxu0 0
    %202 = vmatprep.mubr.bf16.mxu0 0
    %203 = vmatmul.mubr.bf16.gmra.mxu0 %v165
    %v204 = vpop.f32.mrf.mxu0
    %v205 = vadd.f32 %v139, %v204
    %v206 = vpop.f32.mrf.mxu0
    %v207 = vpop.f32.mrf.mxu0
    %v208 = vadd.f32 %v143, %v207
    %v209 = vpop.f32.mrf.mxu0
    %210 = vmatprep.mubr.bf16.mxu0 0
    %211 = vmatmul.mubr.bf16.gmra.mxu0 %v168
    %v212 = vpop.f32.mrf.mxu0
    %v213 = vadd.f32 %v147, %v212
    %v214 = vpop.f32.mrf.mxu0
    %v215 = vpop.f32.mrf.mxu0
    %v216 = vadd.f32 %v151, %v215
    %v217 = vpop.f32.mrf.mxu0
    %218 = vdwg.mxu0
    %v219 = vmax.f32 %v205, 0.0
    %v220 = vmax.f32 %v208, 0.0
    %v221 = vmax.f32 %v213, 0.0
    %v222 = vmax.f32 %v216, 0.0
    %v223 = vld [vmem:[%s3] sm:$0xf]
    %v224 = vld [vmem:[%s3 + $0x4] sm:$0xf]
    %v225 = vld [vmem:[%s3 + $0x8] sm:$0xf]
    %v226 = vld [vmem:[%s3 + $0xc] sm:$0xf]
    %v227 = vpack.c.bf16 %v220, %v219
    %v228 = vpack.c.bf16 %v222, %v221
    %229 = vset.pattern.permute.xlu0 2
    %230 = vperm.xlu0 %229, %v28
    %v231 = vpop.permute.xlu0 %230
    %233 = vset.pattern.permute.xlu0 2
    %234 = vperm.xlu0 %233, %v29
    %v235 = vpop.permute.xlu0 %234
    %237 = vset.pattern.permute.xlu0 2
    %238 = vperm.xlu0 %237, %v30
    %v239 = vpop.permute.xlu0 %238
    %241 = vset.pattern.permute.xlu0 2
    %242 = vperm.xlu0 %241, %v31
    %v243 = vpop.permute.xlu0 %242
    %v249 = vunpack.c.l.b16 %v223
    %v250 = vunpack.c.l.b16 %v224
    %v251 = vunpack.c.l.b16 %v225
    %v252 = vunpack.c.l.b16 %v226
    %v253 = vpack.c.b16 %v250, %v249
    %v254 = vpack.c.b16 %v252, %v251
    %v256 = vsel %vm163, %v253, 0
    %v259 = vsel %vm163, %v254, 0
    %261 = vmatprep.subr.bf16.mxu0 0
    %262 = vmatpush1.bf16.msra.mxu0 0
    %263 = vmatprep.subr.bf16.mxu0 0
    %264 = vmatpush1.bf16.msra.mxu0 0
    %265 = vmatprep.subr.bf16.mxu0 0
    %266 = vmatpush1.bf16.msra.mxu0 0
    %267 = vmatprep.subr.bf16.mxu0 0
    %268 = vmatpush1.bf16.msra.mxu0 0
    %269 = vmatprep.subr.bf16.mxu0 0
    %270 = vmatpush1.bf16.msra.mxu0 0
    %271 = vmatprep.subr.bf16.mxu0 0
    %272 = vmatpush1.bf16.msra.mxu0 0
    %273 = vmatprep.subr.bf16.mxu0 0
    %274 = vmatpush1.bf16.msra.mxu0 %v228
    %275 = vmatprep.subr.bf16.mxu0 0
    %276 = vmatpush1.bf16.msra.mxu0 %v227
    %277 = vmatprep.subr.bf16.mxu0 0
    %278 = vmatpush2.bf16.msra.mxu0 0
    %279 = vmatprep.subr.bf16.mxu0 0
    %280 = vmatpush2.bf16.msra.mxu0 0
    %281 = vmatprep.subr.bf16.mxu0 0
    %282 = vmatpush2.bf16.msra.mxu0 0
    %283 = vmatprep.subr.bf16.mxu0 0
    %284 = vmatpush2.bf16.msra.mxu0 0
    %285 = vmatprep.subr.bf16.mxu0 0
    %286 = vmatpush2.bf16.msra.mxu0 0
    %287 = vmatprep.subr.bf16.mxu0 0
    %288 = vmatpush2.bf16.msra.mxu0 0
    %289 = vmatprep.subr.bf16.mxu0 0
    %290 = vmatpush2.bf16.msra.mxu0 0
    %291 = vmatprep.subr.bf16.mxu0 0
    %292 = vmatpush2.bf16.msra.mxu0 0
    %293 = vmatprep.mubr.bf16.mxu0 0
    %294 = vmatmul.mubr.bf16.gmra.mxu0 %v256
    %v295 = vpop.f32.mrf.mxu0
    %v296 = vadd.f32 %v231, %v295
    %v297 = vpop.f32.mrf.mxu0
    %v298 = vpop.f32.mrf.mxu0
    %v299 = vadd.f32 %v235, %v298
    %v300 = vpop.f32.mrf.mxu0
    %301 = vmatprep.mubr.bf16.mxu0 0
    %302 = vmatmul.mubr.bf16.gmra.mxu0 %v259
    %v303 = vpop.f32.mrf.mxu0
    %v304 = vadd.f32 %v239, %v303
    %v305 = vpop.f32.mrf.mxu0
    %v306 = vpop.f32.mrf.mxu0
    %v307 = vadd.f32 %v243, %v306
    %v308 = vpop.f32.mrf.mxu0
    %309 = vdwg.mxu0
    %v310 = vmax.f32 %v296, 0.0
    %v311 = vmax.f32 %v299, 0.0
    %v312 = vmax.f32 %v304, 0.0
    %v313 = vmax.f32 %v307, 0.0
    %314 = vset.pattern.permute.xlu0 3
    %315 = vperm.xlu0 %314, %v28
    %v316 = vpop.permute.xlu0 %315
    %318 = vset.pattern.permute.xlu0 3
    %319 = vperm.xlu0 %318, %v29
    %v320 = vpop.permute.xlu0 %319
    %322 = vset.pattern.permute.xlu0 3
    %323 = vperm.xlu0 %322, %v30
    %v324 = vpop.permute.xlu0 %323
    %326 = vset.pattern.permute.xlu0 3
    %327 = vperm.xlu0 %326, %v31
    %v328 = vpop.permute.xlu0 %327
    %v330 = vmul.f32 %v310, %v316
    %v331 = vmul.f32 %v311, %v320
    %v332 = vmul.f32 %v312, %v324
    %v333 = vmul.f32 %v313, %v328
    %v334 = vadd.f32 %v330, %v331
    %v335 = vadd.f32 %v334, %v332
    %v336 = vadd.f32 %v335, %v333
    %v337 = vrot.slane %v336, 4
    %v338 = vadd.f32 %v336, %v337
    %v339 = vrot.slane %v338, 2
    %v340 = vadd.f32 %v338, %v339
    %v341 = vrot.slane %v340, 1
    %v342 = vadd.f32 %v340, %v341
    %v343 = vld [vmem:[%s4] sm:$0x1]
    %345 = vset.pattern.permute.xlu0 4
    %346 = vperm.xlu0 %345, %v343
    %v347 = vpop.permute.xlu0 %346
    %v349 = vadd.f32 %v342, %v347
    %350 = vst [vmem:[#allocation2] sm:$0x1] %v349
    // Predicated region
    $region22: #{tpu_custom_call.1} parent=1 // pred_check
      _
    $region23: #{tpu_custom_call.1} parent=1 // pred_check_branch
      %352 = sbr.rel (0) target = $region25
    $region24: #{tpu_custom_call.1} parent=1 // pred_region
      %s354 = ssub.s32 16, 16
      %355 = vsyncadd [#allocation3], %s354
      %s357 = sshll.u32 [#allocation2], 4
      %s358 = int_to_ptr.vmem [resolvable:$true] %s357
      %360 = dma.vmem_to_hbm [thread:$0]  %s358, 16, %s5, [#allocation3]
    $region25: #{tpu_custom_call.1} parent=1 // pred_fallthru
      _
    // Predicated region
    $region26: #{tpu_custom_call.1} parent=1 // pred_check
      _
    $region27: #{tpu_custom_call.1} parent=1 // pred_check_branch
      %362 = sbr.rel (0) target = $region29
    $region28: #{tpu_custom_call.1} parent=1 // pred_region
      %363 = dma.done [#allocation3], 16
    $region29: #{tpu_custom_call.1} parent=1 // pred_fallthru
      _
    %364 = vsyncpa [#allocation3], 1

</llo_original>
